<compile_context>
chip_gen: v5e
topology: v5e:2x2
jax: 0.10.0
libtpu: 0.0.40
codegen_flags: <defaults>
</compile_context>

<pallas_src>
import functools

import jax
import jax.numpy as jnp
import numpy as np
from jax import lax
from jax.experimental import pallas as pl
from jax.experimental.pallas import tpu as pltpu

_SMOOTH = 1e-5
_ACC_W = 512          # lane width of the per-class accumulators (multiple of 128)


def _choose_spatial_tile(n_classes, spatial):
    """Return (padded spatial size, spatial tile); tile divides the padded size."""
    s_pad = ((spatial + _ACC_W - 1) // _ACC_W) * _ACC_W
    m = s_pad // _ACC_W
    # target <= ~1 MiB f32 per score block and at most 32 inner chunks of 512 lanes
    max_chunks = max(1, min(32, (1 << 20) // (4 * n_classes * _ACC_W)))
    chunks = 1
    for cand in range(min(max_chunks, m), 0, -1):
        if m % cand == 0:
            chunks = cand
            break
    return s_pad, chunks * _ACC_W


def _make_dice_kernel(n_classes, tile, softmax):
    n_chunks = tile // _ACC_W

    def kernel(score_ref, tgt_ref, out_ref):
        # score_ref: (1, C, tile)  tgt_ref: (1, 1, tile)  out_ref: (1, 3, C, 512)
        @pl.when(pl.program_id(1) == 0)
        def _():
            out_ref[...] = jnp.zeros_like(out_ref)

        cls = lax.broadcasted_iota(jnp.int32, (n_classes, 1), 0)

        acc_i = out_ref[0, 0]     # (C, 512) running intersect
        acc_y = out_ref[0, 1]     # (C, 512) running y_sum (sum of one-hot)
        acc_z = out_ref[0, 2]     # (C, 512) running z_sum (sum of score^2)

        for j in range(n_chunks):                 # static, fully unrolled
            lo = j * _ACC_W
            s = score_ref[0, :, lo:lo + _ACC_W].astype(jnp.float32)   # (C, 512)
            g = tgt_ref[0, :, lo:lo + _ACC_W]                         # (1, 512) int32
            t = (g == cls).astype(jnp.float32)                        # (C, 512) one-hot

            if softmax:
                m = jnp.max(s, axis=0, keepdims=True)
                e = jnp.exp(s - m)                                    # EUP slot
                s = e / jnp.sum(e, axis=0, keepdims=True)
                s = jnp.where(g >= 0, s, 0.0)     # zero spatial padding (label == -1)

            acc_i = acc_i + s * t
            acc_y = acc_y + t                     # one-hot: t*t == t
            acc_z = acc_z + s * s

        out_ref[0, 0] = acc_i
        out_ref[0, 1] = acc_y
        out_ref[0, 2] = acc_z

    return kernel


@functools.partial(jax.jit, static_argnames=("n_classes", "softmax"))
def dice_loss(inputs, target, n_classes, weight=None, softmax=False):
    """Pallas implementation of DiceLoss.forward.

    inputs : (N, C, H, W) float  (NCHW, matches the PyTorch module; f32 or bf16)
    target : (N, 1, H, W) int    class labels in [0, n_classes)
    """
    N, C, H, W = inputs.shape
    assert C == n_classes, "predict & target shape do not match"

    S = H * W
    s_pad, tile = _choose_spatial_tile(C, S)
    n_tiles = s_pad // tile

    score = inputs.reshape(N, C, S)                    # free, contiguous (no transpose)
    tgt = target.reshape(N, 1, S).astype(jnp.int32)
    if s_pad != S:
        score = jnp.pad(score, ((0, 0), (0, 0), (0, s_pad - S)))          # zeros
        tgt = jnp.pad(tgt, ((0, 0), (0, 0), (0, s_pad - S)),
                      constant_values=-1)              # -1 never matches a class

    partials = pl.pallas_call(
        _make_dice_kernel(C, tile, softmax),
        out_shape=jax.ShapeDtypeStruct((N, 3, C, _ACC_W), jnp.float32),
        grid=(N, n_tiles),
        in_specs=[
            pl.BlockSpec((1, C, tile), lambda n, t: (n, 0, t)),   # score tile (full C)
            pl.BlockSpec((1, 1, tile), lambda n, t: (n, 0, t)),   # target tile
        ],
        out_specs=pl.BlockSpec((1, 3, C, _ACC_W), lambda n, t: (n, 0, 0, 0)),
        compiler_params=pltpu.CompilerParams(
            dimension_semantics=("parallel", "arbitrary")),       # batch || , spatial acc
    )(score, tgt)

    # tiny epilogue in plain JAX: final cross-lane reduce + weighted dice
    sums = jnp.sum(partials, axis=(0, 3))              # (3, C)
    intersect, y_sum, z_sum = sums[0], sums[1], sums[2]
    dice = 1.0 - (2.0 * intersect + _SMOOTH) / (z_sum + y_sum + _SMOOTH)

    if weight is None:
        weight = [1.0] * n_classes
    w = jnp.asarray(weight, dtype=jnp.float32)
    return jnp.sum(dice * w) / n_classes


def dice_loss_ref(inputs, target, n_classes, weight=None, softmax=False):
    """Pure-JAX reference matching the PyTorch module semantics exactly."""
    if softmax:
        inputs = jax.nn.softmax(inputs, axis=1)
    onehot = jnp.concatenate(
        [(target == i).astype(jnp.float32) for i in range(n_classes)], axis=1)
    if weight is None:
        weight = [1.0] * n_classes
    smooth = 1e-5
    loss = 0.0
    for i in range(n_classes):
        s = inputs[:, i]
        t = onehot[:, i]
        intersect = jnp.sum(s * t)
        y_sum = jnp.sum(t * t)
        z_sum = jnp.sum(s * s)
        dice = 1.0 - (2.0 * intersect + smooth) / (z_sum + y_sum + smooth)
        loss = loss + dice * weight[i]
    return loss / n_classes


if __name__ == "__main__":
    N, C, H, W = 2, 4, 16, 16
    key = jax.random.PRNGKey(0)
    k1, k2 = jax.random.split(key)
    inputs = jax.random.normal(k1, (N, C, H, W), dtype=jnp.float32)       # logits
    target = jax.random.randint(k2, (N, 1, H, W), 0, C, dtype=jnp.int32)  # labels

    # fused-softmax path
    out = dice_loss(inputs, target, n_classes=C, softmax=True)
    out = jax.block_until_ready(out)
    ref = dice_loss_ref(inputs, target, n_classes=C, softmax=True)
    np.testing.assert_allclose(np.asarray(out), np.asarray(ref), rtol=5e-5, atol=1e-6)

    # probability inputs + per-class weights
    probs = jax.nn.softmax(inputs, axis=1)
    w = jnp.array([1.0, 2.0, 0.5, 1.5], dtype=jnp.float32)
    out2 = dice_loss(probs, target, n_classes=C, weight=w, softmax=False)
    out2 = jax.block_until_ready(out2)
    ref2 = dice_loss_ref(probs, target, n_classes=C, weight=w, softmax=False)
    np.testing.assert_allclose(np.asarray(out2), np.asarray(ref2), rtol=5e-5, atol=1e-6)

    print("KERNEL_OK")
</pallas_src>

<mosaic_0001>
module attributes {stable_mosaic.version = 11 : i64} {
  func.func @kernel(%arg0: i32, %arg1: i32, %arg2: memref<1x4x512xf32, #tpu.memory_space<vmem>>, %arg3: memref<1x1x512xi32, #tpu.memory_space<vmem>>, %arg4: memref<1x3x4x512xf32, #tpu.memory_space<vmem>>) attributes {dimension_semantics = [#tpu.dimension_semantics<parallel>, #tpu.dimension_semantics<arbitrary>], iteration_bounds = array<i64: 2, 1>, scalar_prefetch = 0 : i64, scratch_operands = 0 : i64, tpu.core_type = #tpu.core_type<tc>, window_params = [{transform_indices = @transform_0, window_bounds = array<i64: 1, 4, 512>}, {transform_indices = @transform_1, window_bounds = array<i64: 1, 1, 512>}, {transform_indices = @transform_2, window_bounds = array<i64: 1, 3, 4, 512>}]} {
    %c0_i32 = arith.constant 0 : i32
    %0 = arith.cmpi eq, %arg1, %c0_i32 : i32
    %1 = arith.extui %0 : i1 to i32
    %c0_i32_0 = arith.constant 0 : i32
    %2 = arith.cmpi ne, %1, %c0_i32_0 : i32
    scf.if %2 {
      %cst_31 = arith.constant 0.000000e+00 : f32
      %48 = vector.broadcast %cst_31 : f32 to vector<1x3x4x512xf32>
      %c0_32 = arith.constant 0 : index
      %c0_33 = arith.constant 0 : index
      %c0_34 = arith.constant 0 : index
      %c0_35 = arith.constant 0 : index
      %49 = vector.load %arg4[%c0_32, %c0_33, %c0_34, %c0_35] : memref<1x3x4x512xf32, #tpu.memory_space<vmem>>, vector<1x3x4x512xf32>
      tpu.vector_store %arg4[%c0_32, %c0_33, %c0_34, %c0_35], %48 {strides = array<i32>} : memref<1x3x4x512xf32, #tpu.memory_space<vmem>>, vector<1x3x4x512xf32>,
    } else {
    }
    %3 = tpu.iota {dimensions = array<i32: 0>} : vector<4x1xi32>
    %c0 = arith.constant 0 : index
    %c0_1 = arith.constant 0 : index
    %c0_2 = arith.constant 0 : index
    %c0_3 = arith.constant 0 : index
    %4 = vector.load %arg4[%c0, %c0_1, %c0_2, %c0_3] : memref<1x3x4x512xf32, #tpu.memory_space<vmem>>, vector<1x1x4x512xf32>
    %5 = vector.shape_cast %4 : vector<1x1x4x512xf32> to vector<4x512xf32>
    %c0_4 = arith.constant 0 : index
    %c1 = arith.constant 1 : index
    %c0_5 = arith.constant 0 : index
    %c0_6 = arith.constant 0 : index
    %6 = vector.load %arg4[%c0_4, %c1, %c0_5, %c0_6] : memref<1x3x4x512xf32, #tpu.memory_space<vmem>>, vector<1x1x4x512xf32>
    %7 = vector.shape_cast %6 : vector<1x1x4x512xf32> to vector<4x512xf32>
    %c0_7 = arith.constant 0 : index
    %c2 = arith.constant 2 : index
    %c0_8 = arith.constant 0 : index
    %c0_9 = arith.constant 0 : index
    %8 = vector.load %arg4[%c0_7, %c2, %c0_8, %c0_9] : memref<1x3x4x512xf32, #tpu.memory_space<vmem>>, vector<1x1x4x512xf32>
    %9 = vector.shape_cast %8 : vector<1x1x4x512xf32> to vector<4x512xf32>
    %c0_10 = arith.constant 0 : index
    %c0_11 = arith.constant 0 : index
    %c0_12 = arith.constant 0 : index
    %10 = vector.load %arg2[%c0_10, %c0_11, %c0_12] : memref<1x4x512xf32, #tpu.memory_space<vmem>>, vector<1x4x512xf32>
    %11 = vector.shape_cast %10 : vector<1x4x512xf32> to vector<4x512xf32>
    %c0_13 = arith.constant 0 : index
    %c0_14 = arith.constant 0 : index
    %c0_15 = arith.constant 0 : index
    %12 = vector.load %arg3[%c0_13, %c0_14, %c0_15] : memref<1x1x512xi32, #tpu.memory_space<vmem>>, vector<1x1x512xi32>
    %13 = vector.shape_cast %12 : vector<1x1x512xi32> to vector<1x512xi32>
    %14 = vector.broadcast %13 : vector<1x512xi32> to vector<4x512xi32>
    %15 = vector.broadcast %3 : vector<4x1xi32> to vector<4x512xi32>
    %16 = arith.cmpi eq, %14, %15 : vector<4x512xi32>
    %17 = arith.extui %16 : vector<4x512xi1> to vector<4x512xi32>
    %18 = arith.sitofp %17 : vector<4x512xi32> to vector<4x512xf32>
    %cst = arith.constant dense<0xFF800000> : vector<512xf32>
    %19 = vector.multi_reduction <maximumf>, %11, %cst [0] : vector<4x512xf32> to vector<512xf32>
    %20 = vector.shape_cast %19 : vector<512xf32> to vector<1x512xf32>
    %21 = vector.broadcast %20 : vector<1x512xf32> to vector<4x512xf32>
    %22 = arith.subf %11, %21 : vector<4x512xf32>
    %23 = math.exp %22 : vector<4x512xf32>
    %cst_16 = arith.constant dense<0.000000e+00> : vector<512xf32>
    %24 = vector.multi_reduction <add>, %23, %cst_16 [0] : vector<4x512xf32> to vector<512xf32>
    %25 = vector.shape_cast %24 : vector<512xf32> to vector<1x512xf32>
    %26 = vector.broadcast %25 : vector<1x512xf32> to vector<4x512xf32>
    %27 = arith.divf %23, %26 : vector<4x512xf32>
    %c0_i32_17 = arith.constant 0 : i32
    %28 = vector.broadcast %c0_i32_17 : i32 to vector<1x512xi32>
    %29 = arith.cmpi sge, %13, %28 : vector<1x512xi32>
    %cst_18 = arith.constant 0.000000e+00 : f32
    %30 = vector.shape_cast %29 : vector<1x512xi1> to vector<1x512xi1>
    %31 = vector.broadcast %30 : vector<1x512xi1> to vector<4x512xi1>
    %32 = vector.broadcast %cst_18 : f32 to vector<4x512xf32>
    %33 = arith.select %31, %27, %32 : vector<4x512xi1>, vector<4x512xf32>
    %34 = arith.mulf %33, %18 : vector<4x512xf32>
    %35 = arith.addf %5, %34 : vector<4x512xf32>
    %36 = arith.addf %7, %18 : vector<4x512xf32>
    %37 = arith.mulf %33, %33 : vector<4x512xf32>
    %38 = arith.addf %9, %37 : vector<4x512xf32>
    %c0_19 = arith.constant 0 : index
    %c0_20 = arith.constant 0 : index
    %c0_21 = arith.constant 0 : index
    %c0_22 = arith.constant 0 : index
    %39 = vector.load %arg4[%c0_19, %c0_20, %c0_21, %c0_22] : memref<1x3x4x512xf32, #tpu.memory_space<vmem>>, vector<1x1x4x512xf32>
    %40 = vector.shape_cast %39 : vector<1x1x4x512xf32> to vector<4x512xf32>
    %41 = vector.shape_cast %35 : vector<4x512xf32> to vector<1x1x4x512xf32>
    tpu.vector_store %arg4[%c0_19, %c0_20, %c0_21, %c0_22], %41 {strides = array<i32>} : memref<1x3x4x512xf32, #tpu.memory_space<vmem>>, vector<1x1x4x512xf32>,
    %c0_23 = arith.constant 0 : index
    %c1_24 = arith.constant 1 : index
    %c0_25 = arith.constant 0 : index
    %c0_26 = arith.constant 0 : index
    %42 = vector.load %arg4[%c0_23, %c1_24, %c0_25, %c0_26] : memref<1x3x4x512xf32, #tpu.memory_space<vmem>>, vector<1x1x4x512xf32>
    %43 = vector.shape_cast %42 : vector<1x1x4x512xf32> to vector<4x512xf32>
    %44 = vector.shape_cast %36 : vector<4x512xf32> to vector<1x1x4x512xf32>
    tpu.vector_store %arg4[%c0_23, %c1_24, %c0_25, %c0_26], %44 {strides = array<i32>} : memref<1x3x4x512xf32, #tpu.memory_space<vmem>>, vector<1x1x4x512xf32>,
    %c0_27 = arith.constant 0 : index
    %c2_28 = arith.constant 2 : index
    %c0_29 = arith.constant 0 : index
    %c0_30 = arith.constant 0 : index
    %45 = vector.load %arg4[%c0_27, %c2_28, %c0_29, %c0_30] : memref<1x3x4x512xf32, #tpu.memory_space<vmem>>, vector<1x1x4x512xf32>
    %46 = vector.shape_cast %45 : vector<1x1x4x512xf32> to vector<4x512xf32>
    %47 = vector.shape_cast %38 : vector<4x512xf32> to vector<1x1x4x512xf32>
    tpu.vector_store %arg4[%c0_27, %c2_28, %c0_29, %c0_30], %47 {strides = array<i32>} : memref<1x3x4x512xf32, #tpu.memory_space<vmem>>, vector<1x1x4x512xf32>,
    return
  }
  func.func @transform_0(%arg0: i32, %arg1: i32) -> (i32, i32, i32) {
    %c0_i32 = arith.constant 0 : i32
    %c0_i32_0 = arith.constant 0 : i32
    return %arg0, %c0_i32, %arg1 : i32, i32, i32
  }
  func.func @transform_1(%arg0: i32, %arg1: i32) -> (i32, i32, i32) {
    %c0_i32 = arith.constant 0 : i32
    %c0_i32_0 = arith.constant 0 : i32
    return %arg0, %c0_i32, %arg1 : i32, i32, i32
  }
  func.func @transform_2(%arg0: i32, %arg1: i32) -> (i32, i32, i32, i32) {
    %c0_i32 = arith.constant 0 : i32
    %c0_i32_0 = arith.constant 0 : i32
    %c0_i32_1 = arith.constant 0 : i32
    %c0_i32_2 = arith.constant 0 : i32
    return %arg0, %c0_i32, %c0_i32_0, %c0_i32_1 : i32, i32, i32, i32
  }
}

</mosaic_0001>

<llo_original>
// kernel: dice_loss.1
$region0: #{dice_loss.1}
  #allocation0 [shape = 'u32[]', space=smem, size = 0x4, offset = 0x4, fixed_abs, tag = 'smem constant byte address 0x4 - core index']
  #allocation1 [shape = 'u32[72,128]{1,0:T(1,128)}', space=vmem, size = 0x9000, scoped, tag = 'internal scratch']
  %s0 = inlined_call_operand.vmem [shape: f32[2,4,512], index: 0, kind: input, shape index: {}]
  %s1 = inlined_call_operand.vmem [shape: s32[2,1,512], index: 1, kind: input, shape index: {}]
  %s2 = inlined_call_operand.vmem [shape: f32[2,3,4,512], index: 2, kind: output, shape index: {}]
  %s3 = sld [smem:[#allocation0]]
  $region45: #{dice_loss.1} parent=0
    _
  %s5 = ssub.s32 1, %s3
  %s6 = scalar_select 0, %s5, %s3
  loop: start=0, step=1, limit=4
  $region2: #{dice_loss.1} parent=0 // loop_pre_header
    _
  $region3: #{dice_loss.1} parent=0 // loop_header
    %s8 = sphi 0, %s12
    %p9 = scmp.ge.s32.totalorder %s8, 4
    %s15 = sphi 0, %s27
    %s16 = sphi 0, %s23
    %s17 = sphi 0, %s15
    %s18 = sphi 0, %s16
    %s19 = sphi 0, %s17
    %s20 = sphi 0, %s18
    %s32 = sphi 0, %s34
    %s35 = sphi 0, %s32
    %s36 = sphi 0, %s35
    %s52 = sphi 0, %s36
    %s60 = sphi 0, %s62
    %s63 = sphi 0, %s60
    %s64 = sphi 0, %s63
    %s80 = sphi 0, %s64
    %s86 = sphi 0, %s88
    %s89 = sphi 0, %s86
    %s90 = sphi 0, %s89
    %s106 = sphi 0, %s90
  $region4: #{dice_loss.1} parent=0 // loop_header_branch
    %11 = sbr.rel (%p9) target = $region8
  $region5: #{dice_loss.1} parent=0 // loop_body
    %s13 = ssub.s32 %s8, 1
    %s14 = ssub.s32 %s8, 2
    %s21 = sadd.s32 1, %s16
    %p22 = scmp.ge.s32.totalorder %s21, 1
    %s23 = scalar_select %p22, 0, %s21
    %s24 = sadd.s32 1, %s15
    %s25 = scalar_select %p22, %s24, %s15
    %p26 = scmp.ge.s32.totalorder %s25, 2
    %s27 = scalar_select %p26, 0, %s25
    %s28 = ssub.s32 %s15, %s27
    %s29 = ssub.s32 %s16, %s23
    %s30 = sor.u32 %s28, %s29
    %p31 = scmp.eq.s32.totalorder %s30, 0
    %s33 = sadd.s32 %s32, 1
    %s34 = scalar_select %p31, %s32, %s33
    %p37 = pneg %p31
    %p38 = scmp.eq.s32.totalorder %s8, 1
    %p39 = por %p37, %p38
    %p40 = scmp.ne.s32.totalorder %s32, %s35
    %p41 = scmp.eq.s32.totalorder %s8, 0
    %p42 = por %p40, %p41
    %p43 = scmp.ne.s32.totalorder %s32, %s35
    %p44 = scmp.eq.s32.totalorder %s13, 1
    %p45 = por %p43, %p44
    %p46 = scmp.ne.s32.totalorder %s35, %s36
    %p47 = scmp.eq.s32.totalorder %s13, 0
    %p48 = por %p46, %p47
    %p49 = scmp.ne.s32.totalorder %s35, %s36
    %p50 = scmp.eq.s32.totalorder %s14, 1
    %p51 = por %p49, %p50
    %p53 = scmp.ne.s32.totalorder %s36, %s52
    %p54 = scmp.eq.s32.totalorder %s14, 0
    %p55 = por %p53, %p54
    %s56 = ssub.s32 %s15, %s27
    %s57 = ssub.s32 %s16, %s23
    %s58 = sor.u32 %s56, %s57
    %p59 = scmp.eq.s32.totalorder %s58, 0
    %s61 = sadd.s32 %s60, 1
    %s62 = scalar_select %p59, %s60, %s61
    %p65 = pneg %p59
    %p66 = scmp.eq.s32.totalorder %s8, 1
    %p67 = por %p65, %p66
    %p68 = scmp.ne.s32.totalorder %s60, %s63
    %p69 = scmp.eq.s32.totalorder %s8, 0
    %p70 = por %p68, %p69
    %p71 = scmp.ne.s32.totalorder %s60, %s63
    %p72 = scmp.eq.s32.totalorder %s13, 1
    %p73 = por %p71, %p72
    %p74 = scmp.ne.s32.totalorder %s63, %s64
    %p75 = scmp.eq.s32.totalorder %s13, 0
    %p76 = por %p74, %p75
    %p77 = scmp.ne.s32.totalorder %s63, %s64
    %p78 = scmp.eq.s32.totalorder %s14, 1
    %p79 = por %p77, %p78
    %p81 = scmp.ne.s32.totalorder %s64, %s80
    %p82 = scmp.eq.s32.totalorder %s14, 0
    %p83 = por %p81, %p82
    %s84 = ssub.s32 %s15, %s27
    %p85 = scmp.eq.s32.totalorder %s84, 0
    %s87 = sadd.s32 %s86, 1
    %s88 = scalar_select %p85, %s86, %s87
    %p91 = pneg %p85
    %p92 = scmp.eq.s32.totalorder %s8, 1
    %p93 = por %p91, %p92
    %p94 = scmp.ne.s32.totalorder %s86, %s89
    %p95 = scmp.eq.s32.totalorder %s8, 0
    %p96 = por %p94, %p95
    %p97 = scmp.ne.s32.totalorder %s86, %s89
    %p98 = scmp.eq.s32.totalorder %s13, 1
    %p99 = por %p97, %p98
    %p100 = scmp.ne.s32.totalorder %s89, %s90
    %p101 = scmp.eq.s32.totalorder %s13, 0
    %p102 = por %p100, %p101
    %p103 = scmp.ne.s32.totalorder %s89, %s90
    %p104 = scmp.eq.s32.totalorder %s14, 1
    %p105 = por %p103, %p104
    %p107 = scmp.ne.s32.totalorder %s90, %s106
    %p108 = scmp.eq.s32.totalorder %s14, 0
    %p109 = por %p107, %p108
    %p110 = scmp.le.s32.totalorder 1, %s8
    %p111 = scmp.lt.s32.totalorder %s8, 3
    %p112 = pnand %p110, %p111
    %p113 = pneg %p112
    // Predicated region
    $region9: #{dice_loss.1} parent=5 // pred_check
      _
    $region10: #{dice_loss.1} parent=5 // pred_check_branch
      %115 = sbr.rel (%p112) target = $region12
    $region11: #{dice_loss.1} parent=5 // pred_region
      %s116 = ssub.s32 %s8, 1
    $region12: #{dice_loss.1} parent=5 // pred_fallthru
      _
    %p117 = scmp.lt.s32.totalorder %s8, 2
    // Predicated region
    $region13: #{dice_loss.1} parent=5 // pred_check
      %p118 = pneg %p117
    $region14: #{dice_loss.1} parent=5 // pred_check_branch
      %120 = sbr.rel (%p118) target = $region16
    $region15: #{dice_loss.1} parent=5 // pred_region
      // Predicated region
      $region17: #{dice_loss.1} parent=15 // pred_check
        %p121 = pneg %p42
      $region18: #{dice_loss.1} parent=15 // pred_check_branch
        %123 = sbr.rel (%p121) target = $region20
      $region19: #{dice_loss.1} parent=15 // pred_region
        %s124 = smul.u32 4, %s16
        %p125 = scmp.lt.s32.totalorder %s15, 1
        %s126 = scalar_select %p125, %s15, 1
        %p127 = scmp.lt.s32.totalorder %s124, 3
        %s128 = scalar_select %p127, %s124, 3
        %s129 = smul.addr %s126, 4
        %s130 = sadd.s32 %s128, %s129
        %s131 = smul.addr %s130, 4
        %s132 = scalar_lea.vmem %s0, %s131
        %s133 = smul.u32 4, %s16
      $region20: #{dice_loss.1} parent=15 // pred_fallthru
        _
      // Predicated region
      $region21: #{dice_loss.1} parent=15 // pred_check
        %p134 = pneg %p70
      $region22: #{dice_loss.1} parent=15 // pred_check_branch
        %136 = sbr.rel (%p134) target = $region24
      $region23: #{dice_loss.1} parent=15 // pred_region
        %s137 = smul.u32 4, %s16
        %p138 = scmp.lt.s32.totalorder %s15, 1
        %s139 = scalar_select %p138, %s15, 1
        %p140 = scmp.lt.s32.totalorder %s137, 3
        %s141 = scalar_select %p140, %s137, 3
        %s142 = smul.addr %s139, 4
        %s143 = sadd.s32 %s141, %s142
        %s144 = scalar_lea.vmem %s1, %s143
        %s145 = smul.u32 4, %s16
      $region24: #{dice_loss.1} parent=15 // pred_fallthru
        _
    $region16: #{dice_loss.1} parent=5 // pred_fallthru
      _
    %p146 = scmp.le.s32.totalorder 1, %s8
    %p147 = scmp.lt.s32.totalorder %s8, 3
    %p148 = pnand %p146, %p147
    %p149 = pneg %p148
    // Predicated region
    $region25: #{dice_loss.1} parent=5 // pred_check
      _
    $region26: #{dice_loss.1} parent=5 // pred_check_branch
      %151 = sbr.rel (%p148) target = $region28
    $region27: #{dice_loss.1} parent=5 // pred_region
      %s152 = ssub.s32 %s8, 1
      %s153 = smul.u32 4, %s18
      %p154 = scmp.lt.s32.totalorder %s17, 1
      %s155 = scalar_select %p154, %s17, 1
      %p156 = scmp.lt.s32.totalorder %s153, 3
      %s157 = scalar_select %p156, %s153, 3
      %s158 = smul.addr %s155, 4
      %s159 = sadd.s32 %s157, %s158
      %s160 = smul.addr %s159, 4
      %s161 = scalar_lea.vmem %s0, %s160
      %p162 = pneg %p48
      %p163 = pneg %p45
      %s164 = smul.u32 4, %s18
      %p165 = scmp.lt.s32.totalorder %s17, 1
      %s166 = scalar_select %p165, %s17, 1
      %p167 = scmp.lt.s32.totalorder %s164, 3
      %s168 = scalar_select %p167, %s164, 3
      %s169 = smul.addr %s166, 4
      %s170 = sadd.s32 %s168, %s169
      %s171 = scalar_lea.vmem %s1, %s170
      %p172 = pneg %p76
      %p173 = pneg %p73
      %p174 = pneg %p102
      %p175 = pneg %p99
      %p176 = scmp.lt.s32.totalorder %s17, 1
      %s177 = scalar_select %p176, %s17, 1
      %s178 = smul.addr %s177, 12
      %s179 = smul.addr %s178, 4
      %s180 = scalar_lea.vmem %s2, %s179
      %s181 = smul.u32 4, %s18
      %p182 = scmp.lt.s32.totalorder %s17, 1
      %s183 = scalar_select %p182, %s17, 1
      %p184 = scmp.lt.s32.totalorder %s181, 3
      %s185 = scalar_select %p184, %s181, 3
      %s186 = smul.addr %s183, 4
      %s187 = sadd.s32 %s185, %s186
      %s188 = smul.addr %s187, 4
      %s189 = scalar_lea.vmem %s0, %s188
      %s190 = smul.u32 4, %s18
      %s191 = smul.u32 4, %s18
      %p192 = scmp.lt.s32.totalorder %s17, 1
      %s193 = scalar_select %p192, %s17, 1
      %p194 = scmp.lt.s32.totalorder %s191, 3
      %s195 = scalar_select %p194, %s191, 3
      %s196 = smul.addr %s193, 4
      %s197 = sadd.s32 %s195, %s196
      %s198 = scalar_lea.vmem %s1, %s197
      %s199 = smul.u32 4, %s18
      %p200 = scmp.lt.s32.totalorder %s17, 1
      %s201 = scalar_select %p200, %s17, 1
      %s202 = smul.addr %s201, 12
      %s203 = smul.addr %s202, 4
      %s204 = scalar_lea.vmem %s2, %s203
      %p205 = scmp.eq.s32.totalorder %s18, 0
      // Predicated region
      $region29: #{dice_loss.1} parent=27 // pred_check
        %p206 = pneg %p205
      $region30: #{dice_loss.1} parent=27 // pred_check_branch
        %208 = sbr.rel (%p206) target = $region32
      $region31: #{dice_loss.1} parent=27 // pred_region
        %209 = vst [vmem:[%s204] sm:$0xff] 0.0
        %210 = vst [vmem:[%s204 + $0x8] sm:$0xff] 0.0
        %211 = vst [vmem:[%s204 + $0x10] sm:$0xff] 0.0
        %212 = vst [vmem:[%s204 + $0x18] sm:$0xff] 0.0
        %213 = vst [vmem:[%s204 + $0x20] sm:$0xff] 0.0
        %214 = vst [vmem:[%s204 + $0x28] sm:$0xff] 0.0
      $region32: #{dice_loss.1} parent=27 // pred_fallthru
        _
      %v215 = vlaneseq
      %v216 = vshrl.u32 %v215, 7
      %v217 = vld [vmem:[%s204] sm:$0xff]
      %v218 = vld [vmem:[%s204 + $0x8] sm:$0xff]
      %s219 = scalar_lea.vmem %s204, 16
      %v220 = vld [vmem:[%s219] sm:$0xff]
      %v221 = vld [vmem:[%s219 + $0x8] sm:$0xff]
      %s222 = scalar_lea.vmem %s204, 32
      %v223 = vld [vmem:[%s222] sm:$0xff]
      %v224 = vld [vmem:[%s222 + $0x8] sm:$0xff]
      %v225 = vld [vmem:[%s189] sm:$0xff]
      %v226 = vld [vmem:[%s189 + $0x8] sm:$0xff]
      %v227 = vld [vmem:[%s198] sm:$0xf]
      %v228 = vperm.slane %v227, 0
      %v229 = vperm.slane %v227, 1
      %v230 = vperm.slane %v227, 2
      %v231 = vperm.slane %v227, 3
      %vm232 = vcmp.eq.s32.totalorder %v228, %v216
      %vm233 = vcmp.eq.s32.totalorder %v229, %v216
      %vm234 = vcmp.eq.s32.totalorder %v230, %v216
      %vm235 = vcmp.eq.s32.totalorder %v231, %v216
      %v236 = vsel %vm232, 1, 0
      %v237 = vsel %vm233, 1, 0
      %v238 = vsel %vm234, 1, 0
      %v239 = vsel %vm235, 1, 0
      %v240 = vcvt.s32.f32 %v236
      %v241 = vcvt.s32.f32 %v237
      %v242 = vcvt.s32.f32 %v238
      %v243 = vcvt.s32.f32 %v239
      %246 = vst [vmem:[#allocation1] ss:$2 sm:$0xff] %v225
      %s247 = scalar_lea.vmem [#allocation1], 16
      %248 = vst [vmem:[%s247] ss:$2 sm:$0xff] %v226
      %v249 = vld.sshfl [vmem:[#allocation1] sm:$0xff pattern:$0x75316420]
      %v250 = vld.sshfl [vmem:[#allocation1 + $0x8] sm:$0xff pattern:$0x75316420]
      %v251 = vld.sshfl [vmem:[#allocation1 + $0x10] sm:$0xff pattern:$0x75316420]
      %v252 = vld.sshfl [vmem:[#allocation1 + $0x18] sm:$0xff pattern:$0x75316420]
      %vm257 = vcmask 1043456
      %v258 = vsel %vm257, %v249, -inf
      %v259 = vrot.slane %v258, 4
      %v260 = vmax.f32 %v258, %v259
      %v261 = vrot.slane %v260, 2
      %v262 = vmax.f32 %v260, %v261
      %v263 = vrot.slane %v262, 1
      %v264 = vmax.f32 %v262, %v263
      %v265 = vsel %vm257, %v250, -inf
      %v266 = vrot.slane %v265, 4
      %v267 = vmax.f32 %v265, %v266
      %v268 = vrot.slane %v267, 2
      %v269 = vmax.f32 %v267, %v268
      %v270 = vrot.slane %v269, 1
      %v271 = vmax.f32 %v269, %v270
      %v272 = vsel %vm257, %v251, -inf
      %v273 = vrot.slane %v272, 4
      %v274 = vmax.f32 %v272, %v273
      %v275 = vrot.slane %v274, 2
      %v276 = vmax.f32 %v274, %v275
      %v277 = vrot.slane %v276, 1
      %v278 = vmax.f32 %v276, %v277
      %v279 = vsel %vm257, %v252, -inf
      %v280 = vrot.slane %v279, 4
      %v281 = vmax.f32 %v279, %v280
      %v282 = vrot.slane %v281, 2
      %v283 = vmax.f32 %v281, %v282
      %v284 = vrot.slane %v283, 1
      %v285 = vmax.f32 %v283, %v284
      %v290 = vrot.slane %v271, 4
      %v291 = vrot.slane %v285, 4
      %v292 = vsel %vm257, %v264, %v290
      %v293 = vsel %vm257, %v278, %v291
      %v296 = vsub.f32 %v225, %v292
      %v297 = vsub.f32 %v226, %v293
      %v298 = vmul.f32 %v296, 1.442695
      %v299 = vpow.pop %v298
      %v300 = vmul.f32 %v297, 1.442695
      %v301 = vpow.pop %v300
      %304 = vst [vmem:[#allocation1] ss:$2 sm:$0xff] %v299
      %s305 = scalar_lea.vmem [#allocation1], 16
      %306 = vst [vmem:[%s305] ss:$2 sm:$0xff] %v301
      %v307 = vld.sshfl [vmem:[#allocation1] sm:$0xff pattern:$0x75316420]
      %v308 = vld.sshfl [vmem:[#allocation1 + $0x8] sm:$0xff pattern:$0x75316420]
      %v309 = vld.sshfl [vmem:[#allocation1 + $0x10] sm:$0xff pattern:$0x75316420]
      %v310 = vld.sshfl [vmem:[#allocation1 + $0x18] sm:$0xff pattern:$0x75316420]
      %v315 = vsel %vm257, %v307, 0.0
      %v316 = vrot.slane %v315, 4
      %v317 = vadd.f32 %v315, %v316
      %v318 = vrot.slane %v317, 2
      %v319 = vadd.f32 %v317, %v318
      %v320 = vrot.slane %v319, 1
      %v321 = vadd.f32 %v319, %v320
      %v322 = vsel %vm257, %v308, 0.0
      %v323 = vrot.slane %v322, 4
      %v324 = vadd.f32 %v322, %v323
      %v325 = vrot.slane %v324, 2
      %v326 = vadd.f32 %v324, %v325
      %v327 = vrot.slane %v326, 1
      %v328 = vadd.f32 %v326, %v327
      %v329 = vsel %vm257, %v309, 0.0
      %v330 = vrot.slane %v329, 4
      %v331 = vadd.f32 %v329, %v330
      %v332 = vrot.slane %v331, 2
      %v333 = vadd.f32 %v331, %v332
      %v334 = vrot.slane %v333, 1
      %v335 = vadd.f32 %v333, %v334
      %v336 = vsel %vm257, %v310, 0.0
      %v337 = vrot.slane %v336, 4
      %v338 = vadd.f32 %v336, %v337
      %v339 = vrot.slane %v338, 2
      %v340 = vadd.f32 %v338, %v339
      %v341 = vrot.slane %v340, 1
      %v342 = vadd.f32 %v340, %v341
      %v347 = vrot.slane %v328, 4
      %v348 = vrot.slane %v342, 4
      %v349 = vsel %vm257, %v321, %v347
      %v350 = vsel %vm257, %v335, %v348
      %v353 = vrcp.pop %v349
      %v354 = vmul.f32 %v349, %v353
      %v355 = vsub.f32 1.0, %v354
      %v356 = vmul.f32 %v353, %v355
      %v357 = vadd.f32 %v353, %v356
      %vm358 = vweird.f32 %v349
      %vm359 = vweird.f32 %v353
      %vm360 = vmor %vm358, %vm359
      %v361 = vsel %vm360, %v353, %v357
      %v362 = vand.u32 2147483647, %v349
      %vm363 = vcmp.eq.f32.partialorder %v362, 8.507059e+37
      %v364 = vand.u32 %v349, 2147483648
      %v365 = vor.u32 1.1754944e-38, %v364
      %v366 = vsel %vm363, %v365, %v361
      %v367 = vmul.f32 %v299, %v366
      %v368 = vrcp.pop %v350
      %v369 = vmul.f32 %v350, %v368
      %v370 = vsub.f32 1.0, %v369
      %v371 = vmul.f32 %v368, %v370
      %v372 = vadd.f32 %v368, %v371
      %vm373 = vweird.f32 %v350
      %vm374 = vweird.f32 %v368
      %vm375 = vmor %vm373, %vm374
      %v376 = vsel %vm375, %v368, %v372
      %v377 = vand.u32 2147483647, %v350
      %vm378 = vcmp.eq.f32.partialorder %v377, 8.507059e+37
      %v379 = vand.u32 %v350, 2147483648
      %v380 = vor.u32 1.1754944e-38, %v379
      %v381 = vsel %vm378, %v380, %v376
      %v382 = vmul.f32 %v301, %v381
      %vm383 = vcmp.ge.s32.totalorder %v227, 0
      %v384 = vsel %vm383, 1, 0
      %v385 = vperm.slane %v384, 0
      %v386 = vperm.slane %v384, 1
      %v387 = vperm.slane %v384, 2
      %v388 = vperm.slane %v384, 3
      %vm389 = vcmp.eq.s32.totalorder %v385, 1
      %vm390 = vcmp.eq.s32.totalorder %v386, 1
      %vm391 = vcmp.eq.s32.totalorder %v387, 1
      %vm392 = vcmp.eq.s32.totalorder %v388, 1
      %395 = vst [vmem:[#allocation1] ss:$2 sm:$0xff] %v367
      %s396 = scalar_lea.vmem [#allocation1], 16
      %397 = vst [vmem:[%s396] ss:$2 sm:$0xff] %v382
      %v398 = vld.sshfl [vmem:[#allocation1] sm:$0xff pattern:$0x75316420]
      %v399 = vld.sshfl [vmem:[#allocation1 + $0x8] sm:$0xff pattern:$0x75316420]
      %v400 = vld.sshfl [vmem:[#allocation1 + $0x10] sm:$0xff pattern:$0x75316420]
      %v401 = vld.sshfl [vmem:[#allocation1 + $0x18] sm:$0xff pattern:$0x75316420]
      %v406 = vsel %vm389, %v398, 0.0
      %v407 = vsel %vm390, %v399, 0.0
      %v408 = vsel %vm391, %v400, 0.0
      %v409 = vsel %vm392, %v401, 0.0
      %v410 = vmul.f32 %v406, %v240
      %v411 = vmul.f32 %v407, %v241
      %v412 = vmul.f32 %v408, %v242
      %v413 = vmul.f32 %v409, %v243
      %v418 = vrot.slane %v411, 4
      %v419 = vrot.slane %v413, 4
      %v420 = vsel %vm257, %v410, %v418
      %v421 = vsel %vm257, %v412, %v419
      %v424 = vadd.f32 %v217, %v420
      %v425 = vadd.f32 %v218, %v421
      %v430 = vrot.slane %v241, 4
      %v431 = vrot.slane %v243, 4
      %v432 = vsel %vm257, %v240, %v430
      %v433 = vsel %vm257, %v242, %v431
      %v436 = vadd.f32 %v220, %v432
      %v437 = vadd.f32 %v221, %v433
      %v438 = vmul.f32 %v406, %v406
      %v439 = vmul.f32 %v407, %v407
      %v440 = vmul.f32 %v408, %v408
      %v441 = vmul.f32 %v409, %v409
      %v446 = vrot.slane %v439, 4
      %v447 = vrot.slane %v441, 4
      %v448 = vsel %vm257, %v438, %v446
      %v449 = vsel %vm257, %v440, %v447
      %v452 = vadd.f32 %v223, %v448
      %v453 = vadd.f32 %v224, %v449
      %454 = vst [vmem:[%s204] sm:$0xff] %v424
      %455 = vst [vmem:[%s204 + $0x8] sm:$0xff] %v425
      %456 = vst [vmem:[%s219] sm:$0xff] %v436
      %457 = vst [vmem:[%s219 + $0x8] sm:$0xff] %v437
      %458 = vst [vmem:[%s222] sm:$0xff] %v452
      %459 = vst [vmem:[%s222 + $0x8] sm:$0xff] %v453
      %p460 = scmp.lt.s32.totalorder %s17, 1
      %s461 = scalar_select %p460, %s17, 1
      %s462 = smul.addr %s461, 12
      %s463 = smul.addr %s462, 4
      %s464 = scalar_lea.vmem %s2, %s463
      // Predicated region
      $region33: #{dice_loss.1} parent=27 // pred_check
        %p465 = pneg %p99
      $region34: #{dice_loss.1} parent=27 // pred_check_branch
        %467 = sbr.rel (%p465) target = $region36
      $region35: #{dice_loss.1} parent=27 // pred_region
        _
      $region36: #{dice_loss.1} parent=27 // pred_fallthru
        _
    $region28: #{dice_loss.1} parent=5 // pred_fallthru
      _
    %p468 = scmp.le.s32.totalorder 2, %s8
    // Predicated region
    $region37: #{dice_loss.1} parent=5 // pred_check
      %p469 = pneg %p468
    $region38: #{dice_loss.1} parent=5 // pred_check_branch
      %471 = sbr.rel (%p469) target = $region40
    $region39: #{dice_loss.1} parent=5 // pred_region
      %s472 = ssub.s32 %s8, 2
      // Predicated region
      $region41: #{dice_loss.1} parent=39 // pred_check
        %p473 = pneg %p105
      $region42: #{dice_loss.1} parent=39 // pred_check_branch
        %475 = sbr.rel (%p473) target = $region44
      $region43: #{dice_loss.1} parent=39 // pred_region
        %p476 = scmp.lt.s32.totalorder %s19, 1
        %s477 = scalar_select %p476, %s19, 1
        %s478 = smul.addr %s477, 12
        %s479 = smul.addr %s478, 4
        %s480 = scalar_lea.vmem %s2, %s479
      $region44: #{dice_loss.1} parent=39 // pred_fallthru
        _
    $region40: #{dice_loss.1} parent=5 // pred_fallthru
      _
  $region6: #{dice_loss.1} parent=0 // loop_footer
    %s12 = sadd.s32 1, %s8
  $region7: #{dice_loss.1} parent=0 // loop_footer_branch
    %7 = sbr.rel target = $region3
  $region8: #{dice_loss.1} parent=0 // loop_exit
    _

</llo_original>
